<compile_context>
chip_gen: v5e
topology: v5e:2x2
jax: 0.10.0
libtpu: 0.0.40
codegen_flags: <defaults>
</compile_context>

<pallas_src>
import functools
import math

import jax
import jax.numpy as jnp
from jax.experimental import pallas as pl
from jax.experimental.pallas import tpu as pltpu

ALPHA = 0.4
GAMMA = 2.0
LANES = 128
SUBLANES = 8
MAX_BLOCK_ROWS = 8192          # (8192, 128) f32 block = 4 MiB per input per buffer
MAX_CHUNK_ROWS = 512           # in-kernel sub-chunk: (512, 128) f32 = 256 KiB
VMEM_LIMIT_BYTES = 32 << 20    # explicit scoped-VMEM limit (fits all generations)


def _focal_bce_kernel(preds_ref, labels_ref, partial_ref, *,
                      bm, chunk, groups, nblocks, rows_core):
    c = pl.program_id(0)          # core-split axis ("parallel")
    i = pl.program_id(1)          # sequential reduction axis ("arbitrary")
    bpc = pl.num_programs(1)
    gb = c * bpc + i              # global block index (may be a dummy >= nblocks)

    @pl.when(i == 0)
    def _():
        partial_ref[...] = jnp.zeros_like(partial_ref)

    row0 = gb * bm                # first global 128-wide row of this block
    valid = gb < nblocks          # False only for clamped dummy trailing blocks
    full = row0 + bm <= rows_core # every row of this block is real data
    nchunks = bm // chunk         # static, exact by construction

    def run(apply_mask):
        def body(k, carry):
            r0 = pl.multiple_of(k * chunk, chunk)
            x = preds_ref[pl.ds(r0, chunk), :].astype(jnp.float32)
            y = labels_ref[pl.ds(r0, chunk), :].astype(jnp.float32)
            # Numerically-stable BCE-with-logits (PyTorch formulation):
            #   l = max(x, 0) - x*y + log1p(exp(-|x|))
            bce = jnp.maximum(x, 0.0) - x * y + jnp.log1p(jnp.exp(-jnp.abs(x)))
            if apply_mask:
                local_row = jax.lax.broadcasted_iota(jnp.int32, (chunk, LANES), 0)
                bce = jnp.where(row0 + r0 + local_row < rows_core, bce, 0.0)
            # Fold the chunk into `groups` independent (8,128) accumulators.
            partial_ref[...] += bce.reshape(
                chunk // (groups * SUBLANES), groups * SUBLANES, LANES).sum(axis=0)
            return carry
        jax.lax.fori_loop(0, nchunks, body, 0)

    # Interior blocks: every element is real data -> unmasked accumulation.
    @pl.when(jnp.logical_and(valid, full))
    def _():
        run(False)

    # Boundary block only: mask the rows past the 1024-aligned data end.
    @pl.when(jnp.logical_and(valid, jnp.logical_not(full)))
    def _():
        run(True)


def _bce_sum_ref(x, y):
    x = x.astype(jnp.float32)
    y = y.astype(jnp.float32)
    return jnp.sum(jnp.maximum(x, 0.0) - x * y + jnp.log1p(jnp.exp(-jnp.abs(x))))


def focal_loss_binary(preds, labels, alpha=ALPHA, gamma=GAMMA,
                      block_rows=MAX_BLOCK_ROWS):
    """Scalar focal loss matching FocalLoss_Binary(ignore_index=None).forward."""
    assert preds.shape == labels.shape
    n = preds.size

    flat_p = preds.reshape(-1)
    flat_l = labels.reshape(-1)

    tile = SUBLANES * LANES            # 1024 = one (8,128) vreg tile
    n_tail = n % tile
    n_core = n - n_tail

    # Ragged tail (< 1024 elements) summed with plain JAX; avoids a full-array
    # jnp.pad (an extra full HBM read+write on a memory-bound kernel).
    tail_sum = jnp.float32(0.0)
    if n_tail:
        tail_sum = _bce_sum_ref(jax.lax.slice(flat_p, (n_core,), (n,)),
                                jax.lax.slice(flat_l, (n_core,), (n,)))

    if n_core == 0:
        total = tail_sum
    else:
        if n_tail:
            flat_p = jax.lax.slice(flat_p, (0,), (n_core,))
            flat_l = jax.lax.slice(flat_l, (0,), (n_core,))
        rows = n_core // LANES                       # multiple of 8
        p2 = flat_p.reshape(rows, LANES)
        l2 = flat_l.reshape(rows, LANES)

        bm = min(block_rows, rows)
        chunk = math.gcd(bm, MAX_CHUNK_ROWS)         # divides bm, multiple of 8
        groups = math.gcd(chunk // SUBLANES, 4)      # independent accumulators
        nblocks = pl.cdiv(rows, bm)
        ncores = 2 if nblocks >= 2 else 1            # megacore split (helps v7x)
        bpc = pl.cdiv(nblocks, ncores)
        prows = groups * SUBLANES                    # partial-slab rows per core

        def in_map(c, i):
            # Clamp dummy trailing blocks (ncores*bpc may exceed nblocks) to a
            # valid block; their contribution is skipped inside the kernel.
            return (jnp.minimum(c * bpc + i, nblocks - 1), 0)

        kernel = functools.partial(_focal_bce_kernel, bm=bm, chunk=chunk,
                                   groups=groups, nblocks=nblocks,
                                   rows_core=rows)

        partials = pl.pallas_call(
            kernel,
            out_shape=jax.ShapeDtypeStruct((ncores * prows, LANES), jnp.float32),
            grid_spec=pltpu.PrefetchScalarGridSpec(
                num_scalar_prefetch=0,
                grid=(ncores, bpc),
                in_specs=[
                    pl.BlockSpec((bm, LANES), in_map),
                    pl.BlockSpec((bm, LANES), in_map),
                ],
                out_specs=pl.BlockSpec((prows, LANES), lambda c, i: (c, 0)),
            ),
            compiler_params=pltpu.CompilerParams(
                dimension_semantics=("parallel", "arbitrary"),
                vmem_limit_bytes=VMEM_LIMIT_BYTES),
        )(p2, l2)

        total = jnp.sum(partials) + tail_sum

    # Tiny scalar epilogue in JAX: mean + focal transform.
    mean_bce = total / n
    logpt = -mean_bce
    pt = jnp.exp(logpt)
    return -((1.0 - pt) ** gamma) * alpha * logpt


def _reference(preds, labels, alpha=ALPHA, gamma=GAMMA):
    logpt = -_bce_sum_ref(preds, labels) / preds.size
    pt = jnp.exp(logpt)
    return -((1.0 - pt) ** gamma) * alpha * logpt


def _check(preds, labels, rtol=1e-4, atol=1e-6, **kw):
    loss = jax.block_until_ready(focal_loss_binary(preds, labels, **kw))
    ref = _reference(preds, labels)
    assert jnp.allclose(loss, ref, rtol=rtol, atol=atol), (preds.shape, loss, ref)


if __name__ == "__main__":
    key = jax.random.PRNGKey(0)
    k = jax.random.split(key, 8)

    # Primary small case (aligned, single block, single core).
    p = jax.random.normal(k[0], (2, 4, 16, 16), dtype=jnp.float32)
    l = jax.random.bernoulli(k[1], 0.5, (2, 4, 16, 16)).astype(jnp.float32)
    _check(p, l, rtol=1e-5)

    # Ragged case: exercises the JAX-tail path (no full-array pad).
    p = jax.random.normal(k[2], (3, 3, 17, 19), dtype=jnp.float32)
    l = jax.random.bernoulli(k[3], 0.5, (3, 3, 17, 19)).astype(jnp.float32)
    _check(p, l)

    # Multi-block case with small block_rows override: exercises 2-way core
    # split, the masked boundary block, and the clamped dummy-block path.
    p = jax.random.normal(k[4], (2, 8, 32, 36), dtype=jnp.float32)
    l = jax.random.bernoulli(k[5], 0.5, (2, 8, 32, 36)).astype(jnp.float32)
    _check(p, l, block_rows=64)

    # Narrow-dtype case: bf16 logits fed natively, cast to f32 in-kernel.
    p = jax.random.normal(k[6], (2, 4, 16, 16), dtype=jnp.bfloat16)
    l = jax.random.bernoulli(k[7], 0.5, (2, 4, 16, 16)).astype(jnp.bfloat16)
    _check(p, l, rtol=1e-5)

    print("KERNEL_OK")
</pallas_src>

<mosaic_0001>
module attributes {stable_mosaic.version = 11 : i64} {
  func.func @_focal_bce_kernel(%arg0: i32, %arg1: i32, %arg2: memref<16x128xf32, #tpu.memory_space<vmem>>, %arg3: memref<16x128xf32, #tpu.memory_space<vmem>>, %arg4: memref<16x128xf32, #tpu.memory_space<vmem>>) attributes {dimension_semantics = [#tpu.dimension_semantics<parallel>, #tpu.dimension_semantics<arbitrary>], iteration_bounds = array<i64: 1, 1>, scalar_prefetch = 0 : i64, scratch_operands = 0 : i64, tpu.core_type = #tpu.core_type<tc>, window_params = [{transform_indices = @transform_0, window_bounds = array<i64: 16, 128>}, {transform_indices = @transform_1, window_bounds = array<i64: 16, 128>}, {transform_indices = @transform_2, window_bounds = array<i64: 16, 128>}]} {
    %c1_i32 = arith.constant 1 : i32
    %0 = arith.muli %arg0, %c1_i32 : i32
    %1 = arith.addi %0, %arg1 : i32
    %c0_i32 = arith.constant 0 : i32
    %2 = arith.cmpi eq, %arg1, %c0_i32 : i32
    %3 = arith.extui %2 : i1 to i32
    %c0_i32_0 = arith.constant 0 : i32
    %4 = arith.cmpi ne, %3, %c0_i32_0 : i32
    scf.if %4 {
      %cst = arith.constant 0.000000e+00 : f32
      %16 = vector.broadcast %cst : f32 to vector<16x128xf32>
      %c0 = arith.constant 0 : index
      %c0_6 = arith.constant 0 : index
      %17 = vector.load %arg4[%c0, %c0_6] : memref<16x128xf32, #tpu.memory_space<vmem>>, vector<16x128xf32>
      tpu.vector_store %arg4[%c0, %c0_6], %16 {strides = array<i32>} : memref<16x128xf32, #tpu.memory_space<vmem>>, vector<16x128xf32>,
    } else {
    }
    %c16_i32 = arith.constant 16 : i32
    %5 = arith.muli %1, %c16_i32 : i32
    %c1_i32_1 = arith.constant 1 : i32
    %6 = arith.cmpi slt, %1, %c1_i32_1 : i32
    %c16_i32_2 = arith.constant 16 : i32
    %7 = arith.addi %5, %c16_i32_2 : i32
    %c16_i32_3 = arith.constant 16 : i32
    %8 = arith.cmpi sle, %7, %c16_i32_3 : i32
    %9 = arith.andi %6, %8 : i1
    %10 = arith.extui %9 : i1 to i32
    %c0_i32_4 = arith.constant 0 : i32
    %11 = arith.cmpi ne, %10, %c0_i32_4 : i32
    scf.if %11 {
      %c0_i32_6 = arith.constant 0 : i32
      %c16_i32_7 = arith.constant 16 : i32
      %16 = arith.muli %c0_i32_6, %c16_i32_7 : i32
      %17 = tpu.assume_multiple %16, 16 : i32
      %18 = arith.index_cast %17 : i32 to index
      %c0 = arith.constant 0 : index
      %19 = vector.load %arg2[%18, %c0] : memref<16x128xf32, #tpu.memory_space<vmem>>, vector<16x128xf32>
      %20 = arith.index_cast %17 : i32 to index
      %c0_8 = arith.constant 0 : index
      %21 = vector.load %arg3[%20, %c0_8] : memref<16x128xf32, #tpu.memory_space<vmem>>, vector<16x128xf32>
      %cst = arith.constant 0.000000e+00 : f32
      %22 = vector.broadcast %cst : f32 to vector<16x128xf32>
      %23 = arith.maximumf %19, %22 : vector<16x128xf32>
      %24 = arith.mulf %19, %21 : vector<16x128xf32>
      %25 = arith.subf %23, %24 : vector<16x128xf32>
      %26 = math.absf %19 : vector<16x128xf32>
      %cst_9 = arith.constant 0.000000e+00 : f32
      %27 = vector.broadcast %cst_9 : f32 to vector<16x128xf32>
      %28 = arith.subf %27, %26 : vector<16x128xf32>
      %29 = math.exp %28 : vector<16x128xf32>
      %30 = math.log1p %29 : vector<16x128xf32>
      %31 = arith.addf %25, %30 : vector<16x128xf32>
      %c0_10 = arith.constant 0 : index
      %c0_11 = arith.constant 0 : index
      %32 = vector.load %arg4[%c0_10, %c0_11] : memref<16x128xf32, #tpu.memory_space<vmem>>, vector<16x128xf32>
      %33 = vector.shape_cast %31 : vector<16x128xf32> to vector<1x16x128xf32>
      %cst_12 = arith.constant dense<0.000000e+00> : vector<16x128xf32>
      %34 = vector.multi_reduction <add>, %33, %cst_12 [0] : vector<1x16x128xf32> to vector<16x128xf32>
      %35 = arith.addf %32, %34 : vector<16x128xf32>
      %c0_13 = arith.constant 0 : index
      %c0_14 = arith.constant 0 : index
      %36 = vector.load %arg4[%c0_13, %c0_14] : memref<16x128xf32, #tpu.memory_space<vmem>>, vector<16x128xf32>
      tpu.vector_store %arg4[%c0_13, %c0_14], %35 {strides = array<i32>} : memref<16x128xf32, #tpu.memory_space<vmem>>, vector<16x128xf32>,
      %c1_i32_15 = arith.constant 1 : i32
    } else {
    }
    %true = arith.constant true
    %12 = arith.xori %8, %true : i1
    %13 = arith.andi %6, %12 : i1
    %14 = arith.extui %13 : i1 to i32
    %c0_i32_5 = arith.constant 0 : i32
    %15 = arith.cmpi ne, %14, %c0_i32_5 : i32
    scf.if %15 {
      %c0_i32_6 = arith.constant 0 : i32
      %c16_i32_7 = arith.constant 16 : i32
      %16 = arith.muli %c0_i32_6, %c16_i32_7 : i32
      %17 = tpu.assume_multiple %16, 16 : i32
      %18 = arith.index_cast %17 : i32 to index
      %c0 = arith.constant 0 : index
      %19 = vector.load %arg2[%18, %c0] : memref<16x128xf32, #tpu.memory_space<vmem>>, vector<16x128xf32>
      %20 = arith.index_cast %17 : i32 to index
      %c0_8 = arith.constant 0 : index
      %21 = vector.load %arg3[%20, %c0_8] : memref<16x128xf32, #tpu.memory_space<vmem>>, vector<16x128xf32>
      %cst = arith.constant 0.000000e+00 : f32
      %22 = vector.broadcast %cst : f32 to vector<16x128xf32>
      %23 = arith.maximumf %19, %22 : vector<16x128xf32>
      %24 = arith.mulf %19, %21 : vector<16x128xf32>
      %25 = arith.subf %23, %24 : vector<16x128xf32>
      %26 = math.absf %19 : vector<16x128xf32>
      %cst_9 = arith.constant 0.000000e+00 : f32
      %27 = vector.broadcast %cst_9 : f32 to vector<16x128xf32>
      %28 = arith.subf %27, %26 : vector<16x128xf32>
      %29 = math.exp %28 : vector<16x128xf32>
      %30 = math.log1p %29 : vector<16x128xf32>
      %31 = arith.addf %25, %30 : vector<16x128xf32>
      %32 = tpu.iota {dimensions = array<i32: 0>} : vector<16x128xi32>
      %33 = arith.addi %5, %17 : i32
      %34 = vector.broadcast %33 : i32 to vector<16x128xi32>
      %35 = arith.addi %34, %32 : vector<16x128xi32>
      %c16_i32_10 = arith.constant 16 : i32
      %36 = vector.broadcast %c16_i32_10 : i32 to vector<16x128xi32>
      %37 = arith.cmpi slt, %35, %36 : vector<16x128xi32>
      %cst_11 = arith.constant 0.000000e+00 : f32
      %38 = vector.broadcast %cst_11 : f32 to vector<16x128xf32>
      %39 = arith.select %37, %31, %38 : vector<16x128xi1>, vector<16x128xf32>
      %c0_12 = arith.constant 0 : index
      %c0_13 = arith.constant 0 : index
      %40 = vector.load %arg4[%c0_12, %c0_13] : memref<16x128xf32, #tpu.memory_space<vmem>>, vector<16x128xf32>
      %41 = vector.shape_cast %39 : vector<16x128xf32> to vector<1x16x128xf32>
      %cst_14 = arith.constant dense<0.000000e+00> : vector<16x128xf32>
      %42 = vector.multi_reduction <add>, %41, %cst_14 [0] : vector<1x16x128xf32> to vector<16x128xf32>
      %43 = arith.addf %40, %42 : vector<16x128xf32>
      %c0_15 = arith.constant 0 : index
      %c0_16 = arith.constant 0 : index
      %44 = vector.load %arg4[%c0_15, %c0_16] : memref<16x128xf32, #tpu.memory_space<vmem>>, vector<16x128xf32>
      tpu.vector_store %arg4[%c0_15, %c0_16], %43 {strides = array<i32>} : memref<16x128xf32, #tpu.memory_space<vmem>>, vector<16x128xf32>,
      %c1_i32_17 = arith.constant 1 : i32
    } else {
    }
    return
  }
  func.func @transform_0(%arg0: i32, %arg1: i32) -> (i32, i32) {
    %c1_i32 = arith.constant 1 : i32
    %0 = arith.muli %arg0, %c1_i32 : i32
    %1 = arith.addi %0, %arg1 : i32
    %c0_i32 = arith.constant 0 : i32
    %2 = arith.minsi %1, %c0_i32 : i32
    %c0_i32_0 = arith.constant 0 : i32
    %c0_i32_1 = arith.constant 0 : i32
    return %2, %c0_i32_0 : i32, i32
  }
  func.func @transform_1(%arg0: i32, %arg1: i32) -> (i32, i32) {
    %c1_i32 = arith.constant 1 : i32
    %0 = arith.muli %arg0, %c1_i32 : i32
    %1 = arith.addi %0, %arg1 : i32
    %c0_i32 = arith.constant 0 : i32
    %2 = arith.minsi %1, %c0_i32 : i32
    %c0_i32_0 = arith.constant 0 : i32
    %c0_i32_1 = arith.constant 0 : i32
    return %2, %c0_i32_0 : i32, i32
  }
  func.func @transform_2(%arg0: i32, %arg1: i32) -> (i32, i32) {
    %c0_i32 = arith.constant 0 : i32
    %c0_i32_0 = arith.constant 0 : i32
    return %arg0, %c0_i32 : i32, i32
  }
}

</mosaic_0001>

<llo_original>
// kernel: tpu_custom_call.1
$region0: #{tpu_custom_call.1}
  #allocation0 [shape = 'u32[]', space=smem, size = 0x4, offset = 0x4, fixed_abs, tag = 'smem constant byte address 0x4 - core index']
  #allocation1 [shape = 'u32[72,128]{1,0:T(1,128)}', space=vmem, size = 0x9000, scoped, tag = 'internal scratch']
  %s0 = inlined_call_operand.hbm [shape: f32[16,128], index: 0, kind: input, shape index: {}]
  %s1 = inlined_call_operand.hbm [shape: f32[16,128], index: 1, kind: input, shape index: {}]
  %s2 = inlined_call_operand.hbm [shape: f32[16,128], index: 2, kind: output, shape index: {}]
  %s3 = sld [smem:[#allocation0]]
  $region38: #{tpu_custom_call.1} parent=0
    _
  %s5 = ssub.s32 1, %s3
  %s6 = scalar_select 0, %s5, %s3
  $region1: #{tpu_custom_call.1} parent=0
    #allocation2 [shape = 'u8[8192]{0}', space=vmem, size = 0x2000, scoped, tag = 'input window, operand 0, single buffered']
    #allocation3 [shape = 's32[1]{0}', space=sflag, size = 0x4, scoped, tag = 'scoped memory for tpu_custom_call.1']
    #allocation4 [shape = 's32[1]{0}', space=sflag, size = 0x4, scoped, tag = 'scoped memory for tpu_custom_call.1']
    #allocation5 [shape = 'u8[8192]{0}', space=vmem, size = 0x2000, scoped, tag = 'input window, operand 1, single buffered']
    #allocation6 [shape = 's32[1]{0}', space=sflag, size = 0x4, scoped, tag = 'scoped memory for tpu_custom_call.1']
    #allocation7 [shape = 'u8[8192]{0}', space=vmem, size = 0x2000, scoped, tag = 'output window, operand 0, single buffered']
    %7 = vsyncpa [#allocation3], 0
    %8 = vsyncpa [#allocation6], 0
    %9 = vsyncpa [#allocation4], 0
    // Predicated region
    $region2: #{tpu_custom_call.1} parent=1 // pred_check
      _
    $region3: #{tpu_custom_call.1} parent=1 // pred_check_branch
      %11 = sbr.rel (0) target = $region5
    $region4: #{tpu_custom_call.1} parent=1 // pred_region
      %s12 = sadd.s32 0, 0
      %p13 = scmp.lt.s32.totalorder %s12, 0
      %s14 = scalar_select %p13, %s12, 0
      %s15 = smul.u32 2, %s14
      %17 = vsyncadd [#allocation3], 0
      %s18 = smul.addr %s15, 8
      %s19 = scalar_lea.hbm %s0, %s18
      %s20 = sshll.u32 %s19, 4
      %s21 = int_to_ptr.hbm [resolvable:$true] %s20
      %s22 = sshll.u32 [#allocation2], 4
      %s23 = int_to_ptr.vmem [resolvable:$true] %s22
      %28 = dma.hbm_to_vmem [thread:$0]  %s21, 256, %s23, [#allocation3], 128, 128, 8
    $region5: #{tpu_custom_call.1} parent=1 // pred_fallthru
      _
    // Predicated region
    $region6: #{tpu_custom_call.1} parent=1 // pred_check
      _
    $region7: #{tpu_custom_call.1} parent=1 // pred_check_branch
      %30 = sbr.rel (0) target = $region9
    $region8: #{tpu_custom_call.1} parent=1 // pred_region
      %s31 = sadd.s32 0, 0
      %p32 = scmp.lt.s32.totalorder %s31, 0
      %s33 = scalar_select %p32, %s31, 0
      %s34 = smul.u32 2, %s33
      %36 = vsyncadd [#allocation6], 0
      %s37 = smul.addr %s34, 8
      %s38 = scalar_lea.hbm %s1, %s37
      %s39 = sshll.u32 %s38, 4
      %s40 = int_to_ptr.hbm [resolvable:$true] %s39
      %s41 = sshll.u32 [#allocation5], 4
      %s42 = int_to_ptr.vmem [resolvable:$true] %s41
      %47 = dma.hbm_to_vmem [thread:$0]  %s40, 256, %s42, [#allocation6], 128, 128, 8
    $region9: #{tpu_custom_call.1} parent=1 // pred_fallthru
      _
    // Predicated region
    $region10: #{tpu_custom_call.1} parent=1 // pred_check
      _
    $region11: #{tpu_custom_call.1} parent=1 // pred_check_branch
      %49 = sbr.rel (0) target = $region13
    $region12: #{tpu_custom_call.1} parent=1 // pred_region
      %51 = dma.done [#allocation3], 256
    $region13: #{tpu_custom_call.1} parent=1 // pred_fallthru
      _
    // Predicated region
    $region14: #{tpu_custom_call.1} parent=1 // pred_check
      _
    $region15: #{tpu_custom_call.1} parent=1 // pred_check_branch
      %53 = sbr.rel (0) target = $region17
    $region16: #{tpu_custom_call.1} parent=1 // pred_region
      %55 = dma.done [#allocation6], 256
    $region17: #{tpu_custom_call.1} parent=1 // pred_fallthru
      _
    %s56 = sadd.s32 0, 0
    %p57 = scmp.lt.s32.totalorder %s56, 0
    %s58 = scalar_select %p57, %s56, 0
    %s59 = smul.u32 2, %s58
    %s60 = sadd.s32 0, 0
    %p61 = scmp.lt.s32.totalorder %s60, 0
    %s62 = scalar_select %p61, %s60, 0
    %s63 = smul.u32 2, %s62
    %s64 = sadd.s32 0, 0
    %p65 = scmp.eq.s32.totalorder 0, 0
    // Predicated region
    $region18: #{tpu_custom_call.1} parent=1 // pred_check
      %p66 = pneg %p65
    $region19: #{tpu_custom_call.1} parent=1 // pred_check_branch
      %68 = sbr.rel (%p66) target = $region21
    $region20: #{tpu_custom_call.1} parent=1 // pred_region
      %69 = vst [vmem:[#allocation7] sm:$0xff] 0.0
      %70 = vst [vmem:[#allocation7 + $0x8] sm:$0xff] 0.0
    $region21: #{tpu_custom_call.1} parent=1 // pred_fallthru
      _
    %s71 = smul.u32 %s64, 16
    %p72 = scmp.lt.s32.totalorder %s64, 1
    %s73 = sadd.s32 %s71, 16
    %p74 = scmp.le.s32.totalorder %s73, 16
    %p75 = pnand %p72, %p74
    %p76 = pneg %p75
    // Predicated region
    $region22: #{tpu_custom_call.1} parent=1 // pred_check
      _
    $region23: #{tpu_custom_call.1} parent=1 // pred_check_branch
      %78 = sbr.rel (%p75) target = $region25
    $region24: #{tpu_custom_call.1} parent=1 // pred_region
      %v79 = vld [vmem:[#allocation2] sm:$0xff]
      %v80 = vld [vmem:[#allocation2 + $0x8] sm:$0xff]
      %v81 = vld [vmem:[#allocation5] sm:$0xff]
      %v82 = vld [vmem:[#allocation5 + $0x8] sm:$0xff]
      %v83 = vmax.f32 %v79, 0.0
      %v84 = vmax.f32 %v80, 0.0
      %v85 = vmul.f32 %v79, %v81
      %v86 = vmul.f32 %v80, %v82
      %v87 = vsub.f32 %v83, %v85
      %v88 = vsub.f32 %v84, %v86
      %v89 = vand.u32 2147483647, %v79
      %v90 = vand.u32 2147483647, %v80
      %v91 = vsub.f32 0.0, %v89
      %v92 = vsub.f32 0.0, %v90
      %v93 = vmul.f32 %v91, 1.442695
      %v94 = vpow.pop %v93
      %v95 = vmul.f32 %v92, 1.442695
      %v96 = vpow.pop %v95
      %v97 = vadd.f32 %v94, 1.0
      %v98 = vlog2.pop %v97
      %v99 = vmul.f32 %v98, 0.6931472
      %v100 = vmul.f32 -0.5, %v94
      %v101 = vadd.f32 %v100, 1.0
      %v102 = vmul.f32 %v101, %v94
      %v103 = vand.u32 2147483647, %v94
      %vm104 = vcmp.lt.f32.partialorder %v103, 0.0004427343
      %v105 = vsel %vm104, %v102, %v99
      %v106 = vadd.f32 %v96, 1.0
      %v107 = vlog2.pop %v106
      %v108 = vmul.f32 %v107, 0.6931472
      %v109 = vmul.f32 -0.5, %v96
      %v110 = vadd.f32 %v109, 1.0
      %v111 = vmul.f32 %v110, %v96
      %v112 = vand.u32 2147483647, %v96
      %vm113 = vcmp.lt.f32.partialorder %v112, 0.0004427343
      %v114 = vsel %vm113, %v111, %v108
      %v115 = vadd.f32 %v87, %v105
      %v116 = vadd.f32 %v88, %v114
      %v117 = vld [vmem:[#allocation7] sm:$0xff]
      %v118 = vld [vmem:[#allocation7 + $0x8] sm:$0xff]
      %v119 = vadd.f32 %v115, 0.0
      %v120 = vadd.f32 %v116, 0.0
      %v121 = vadd.f32 %v117, %v119
      %v122 = vadd.f32 %v118, %v120
      %123 = vst [vmem:[#allocation7] sm:$0xff] %v121
      %124 = vst [vmem:[#allocation7 + $0x8] sm:$0xff] %v122
    $region25: #{tpu_custom_call.1} parent=1 // pred_fallthru
      _
    %p125 = scmp.gt.s32.totalorder %s73, 16
    %p126 = pnand %p72, %p125
    %p127 = pneg %p126
    // Predicated region
    $region26: #{tpu_custom_call.1} parent=1 // pred_check
      _
    $region27: #{tpu_custom_call.1} parent=1 // pred_check_branch
      %129 = sbr.rel (%p126) target = $region29
    $region28: #{tpu_custom_call.1} parent=1 // pred_region
      %v130 = vld [vmem:[#allocation2] sm:$0xff]
      %v131 = vld [vmem:[#allocation2 + $0x8] sm:$0xff]
      %v132 = vld [vmem:[#allocation5] sm:$0xff]
      %v133 = vld [vmem:[#allocation5 + $0x8] sm:$0xff]
      %v134 = vmax.f32 %v130, 0.0
      %v135 = vmax.f32 %v131, 0.0
      %v136 = vmul.f32 %v130, %v132
      %v137 = vmul.f32 %v131, %v133
      %v138 = vsub.f32 %v134, %v136
      %v139 = vsub.f32 %v135, %v137
      %v140 = vand.u32 2147483647, %v130
      %v141 = vand.u32 2147483647, %v131
      %v142 = vsub.f32 0.0, %v140
      %v143 = vsub.f32 0.0, %v141
      %v144 = vmul.f32 %v142, 1.442695
      %v145 = vpow.pop %v144
      %v146 = vmul.f32 %v143, 1.442695
      %v147 = vpow.pop %v146
      %v148 = vadd.f32 %v145, 1.0
      %v149 = vlog2.pop %v148
      %v150 = vmul.f32 %v149, 0.6931472
      %v151 = vmul.f32 -0.5, %v145
      %v152 = vadd.f32 %v151, 1.0
      %v153 = vmul.f32 %v152, %v145
      %v154 = vand.u32 2147483647, %v145
      %vm155 = vcmp.lt.f32.partialorder %v154, 0.0004427343
      %v156 = vsel %vm155, %v153, %v150
      %v157 = vadd.f32 %v147, 1.0
      %v158 = vlog2.pop %v157
      %v159 = vmul.f32 %v158, 0.6931472
      %v160 = vmul.f32 -0.5, %v147
      %v161 = vadd.f32 %v160, 1.0
      %v162 = vmul.f32 %v161, %v147
      %v163 = vand.u32 2147483647, %v147
      %vm164 = vcmp.lt.f32.partialorder %v163, 0.0004427343
      %v165 = vsel %vm164, %v162, %v159
      %v166 = vadd.f32 %v138, %v156
      %v167 = vadd.f32 %v139, %v165
      %v168 = vlaneseq
      %v169 = vshrl.u32 %v168, 7
      %v170 = vadd.s32 %v169, 8
      %s171 = sadd.s32 %s71, 0
      %v172 = vstv %s171
      %v173 = vadd.s32 %v172, %v169
      %v174 = vadd.s32 %v172, %v170
      %vm175 = vcmp.lt.s32.totalorder %v173, 16
      %vm176 = vcmp.lt.s32.totalorder %v174, 16
      %v177 = vsel %vm175, %v166, 0.0
      %v178 = vsel %vm176, %v167, 0.0
      %v179 = vld [vmem:[#allocation7] sm:$0xff]
      %v180 = vld [vmem:[#allocation7 + $0x8] sm:$0xff]
      %v181 = vadd.f32 %v177, 0.0
      %v182 = vadd.f32 %v178, 0.0
      %v183 = vadd.f32 %v179, %v181
      %v184 = vadd.f32 %v180, %v182
      %185 = vst [vmem:[#allocation7] sm:$0xff] %v183
      %186 = vst [vmem:[#allocation7 + $0x8] sm:$0xff] %v184
    $region29: #{tpu_custom_call.1} parent=1 // pred_fallthru
      _
    // Predicated region
    $region30: #{tpu_custom_call.1} parent=1 // pred_check
      _
    $region31: #{tpu_custom_call.1} parent=1 // pred_check_branch
      %188 = sbr.rel (0) target = $region33
    $region32: #{tpu_custom_call.1} parent=1 // pred_region
      %190 = vsyncadd [#allocation4], 0
      %s191 = sshll.u32 [#allocation7], 4
      %s192 = int_to_ptr.vmem [resolvable:$true] %s191
      %s193 = sshll.u32 %s2, 4
      %s194 = int_to_ptr.hbm [resolvable:$true] %s193
      %199 = dma.vmem_to_hbm [thread:$0]  %s192, 256, %s194, [#allocation4], 128, 128, 8
    $region33: #{tpu_custom_call.1} parent=1 // pred_fallthru
      _
    // Predicated region
    $region34: #{tpu_custom_call.1} parent=1 // pred_check
      _
    $region35: #{tpu_custom_call.1} parent=1 // pred_check_branch
      %201 = sbr.rel (0) target = $region37
    $region36: #{tpu_custom_call.1} parent=1 // pred_region
      %203 = dma.done [#allocation4], 256
    $region37: #{tpu_custom_call.1} parent=1 // pred_fallthru
      _
    %204 = vsyncpa [#allocation3], 1
    %205 = vsyncpa [#allocation6], 1
    %206 = vsyncpa [#allocation4], 1

</llo_original>
